<compile_context>
chip_gen: v5e
topology: v5e:2x2
jax: 0.10.0
libtpu: 0.0.40
codegen_flags: <defaults>
</compile_context>

<pallas_src>
import functools

import jax
import jax.numpy as jnp
from jax.experimental import pallas as pl
from jax.experimental.pallas import tpu as pltpu

_LANE = 128


# ---------------------------------------------------------------------------
# small host-side helpers
# ---------------------------------------------------------------------------
def _round_up(x, m):
    return ((x + m - 1) // m) * m


def _cdiv(a, b):
    return -(-a // b)


def _largest_divisor_leq(n, cap):
    cap = max(1, min(n, int(cap)))
    for d in range(cap, 0, -1):
        if n % d == 0:
            return d
    return 1


def _nr_reciprocal(d):
    # EUP approximate reciprocal + one Newton-Raphson step (~f32 accuracy).
    r = pl.reciprocal(d, approx=True)
    return r * (2.0 - d * r)


def _vmem_limit_bytes():
    cap = 64 * 1024 * 1024                     # conservative default (v7x per-core)
    try:
        info = pltpu.get_tpu_info()
        c = getattr(info, "vmem_capacity_bytes", None)
        if c:
            cap = int(c)
    except Exception:
        pass
    return int(min(cap * 3 // 4, 100 * 1024 * 1024))


def _pick_tile_n(n128, C, in_bytes, out_bytes, vmem_limit):
    """VMEM-budget-driven tile width (multiple of 128) for the streaming passes."""
    # per-column bytes: double-buffered input + output tiles + ~4 live f32 temps.
    per_col = C * (2 * in_bytes + 2 * out_bytes + 4 * 4) + 32
    fixed = 4 * (C * C + C) * 4 + (2 << 20)    # resident Gram/tailor blocks + slack
    budget = max(int(vmem_limit * 0.8) - fixed, 1 << 20)
    tn = (budget // per_col) // _LANE * _LANE
    # keep any single (C, tn) f32 temporary below ~6 MiB for compiler headroom
    cap = max(_LANE, ((6 << 20) // (4 * C)) // _LANE * _LANE)
    return int(max(_LANE, min(tn, cap, n128)))


# ---------------------------------------------------------------------------
# Two-pass kernels
# ---------------------------------------------------------------------------
def _accum_kernel(x_ref, mat_ref, t_ref, *, eps, n_valid, tile_n,
                  tiles_per_split, needs_mask, dot_dtype):
    """Pass 1: accumulate Gram matrix (C,C) and the tailor numerator (C,1)."""
    n_idx = pl.program_id(2)

    @pl.when(n_idx == 0)
    def _init():
        mat_ref[...] = jnp.zeros_like(mat_ref)
        t_ref[...] = jnp.zeros_like(t_ref)

    xf = x_ref[...].astype(jnp.float32)                      # (C, tn)

    sumsq = jnp.sum(xf * xf, axis=0, keepdims=True)          # (1, tn)
    inv_norm = jax.lax.rsqrt(sumsq)                          # EUP rsqrt
    if needs_mask:
        split = pl.program_id(1)
        start = (split * tiles_per_split + n_idx) * tile_n
        col = jax.lax.broadcasted_iota(jnp.int32, (1, tile_n), 1) + start
        inv_norm = jnp.where(col < n_valid, inv_norm, 0.0)   # zero padded columns
    qn = xf * inv_norm                                       # l2-normalized Q (== K)

    s = jnp.sum(qn, axis=0, keepdims=True) + eps             # (1, tn)
    t_ref[...] += jnp.sum(qn * s, axis=1, keepdims=True)     # (C, 1)

    mat_ref[...] += jax.lax.dot_general(                     # V @ K^T -> (C, C)
        xf.astype(dot_dtype), qn.astype(dot_dtype),
        (((1,), (1,)), ((), ())),
        preferred_element_type=jnp.float32)


def _apply_kernel(gamma_ref, x_ref, mat_ref, tailor_ref, o_ref, *,
                  n_valid, tile_n, needs_mask, dot_dtype):
    """Pass 2: per-tile output = x + gamma * tailor * (value_sum + matrix @ Q)."""
    n_idx = pl.program_id(1)
    xf = x_ref[...].astype(jnp.float32)                      # (C, tn)

    sumsq = jnp.sum(xf * xf, axis=0, keepdims=True)
    inv_norm = jax.lax.rsqrt(sumsq)
    if needs_mask:
        col = jax.lax.broadcasted_iota(jnp.int32, (1, tile_n), 1) + n_idx * tile_n
        inv_norm = jnp.where(col < n_valid, inv_norm, 0.0)
    qn = xf * inv_norm                                       # (C, tn)

    value_sum = jnp.sum(xf, axis=0, keepdims=True)           # (1, tn)
    matrix_sum = value_sum + jnp.dot(
        mat_ref[...].astype(dot_dtype), qn.astype(dot_dtype),
        preferred_element_type=jnp.float32)                  # (C, tn)
    weight_value = matrix_sum * tailor_ref[...]              # (C, tn) * (C, 1)

    gamma = gamma_ref[0]
    # Re-read x for the residual add instead of keeping xf live across the matmul.
    o_ref[...] = (x_ref[...].astype(jnp.float32)
                  + gamma * weight_value).astype(o_ref.dtype)


# ---------------------------------------------------------------------------
# Single-pass (resident slab) kernel, optionally batch-packed
# ---------------------------------------------------------------------------
def _single_pass_kernel(gamma_ref, x_ref, o_ref, *, eps, n_valid, needs_mask,
                        dot_dtype):
    xf = x_ref[...].astype(jnp.float32)                      # (bt, C, Np)
    np_pad = xf.shape[-1]

    sumsq = jnp.sum(xf * xf, axis=1, keepdims=True)          # (bt, 1, Np)
    inv_norm = jax.lax.rsqrt(sumsq)
    if needs_mask:
        col = jax.lax.broadcasted_iota(jnp.int32, (1, 1, np_pad), 2)
        inv_norm = jnp.where(col < n_valid, inv_norm, 0.0)
    qn = xf * inv_norm                                       # (bt, C, Np)

    s = jnp.sum(qn, axis=1, keepdims=True) + eps             # (bt, 1, Np)
    t = jnp.sum(qn * s, axis=2, keepdims=True)               # (bt, C, 1)
    tailor = _nr_reciprocal(jnp.float32(n_valid) + t)        # (bt, C, 1)

    value_sum = jnp.sum(xf, axis=1, keepdims=True)           # (bt, 1, Np)

    xd = xf.astype(dot_dtype)
    qd = qn.astype(dot_dtype)
    matrix = jnp.einsum('bcn,bmn->bcm', xd, qd,
                        preferred_element_type=jnp.float32)  # (bt, C, C)
    matrix_sum = value_sum + jnp.einsum('bcm,bmn->bcn',
                                        matrix.astype(dot_dtype), qd,
                                        preferred_element_type=jnp.float32)
    weight_value = matrix_sum * tailor

    gamma = gamma_ref[0]
    o_ref[...] = (xf + gamma * weight_value).astype(o_ref.dtype)


# ---------------------------------------------------------------------------
# Wrapper
# ---------------------------------------------------------------------------
def channel_linear_attention(x, gamma, eps=1e-6, *, force_two_pass=False,
                             tile_n=None, matmul_dtype=None):
    """x: (B, C, W, H, ch) float array; gamma: shape-(1,) parameter."""
    B, C, W, H, ch = x.shape
    # The torch module adds x (b,C,W,H,ch) to weight_value.view(b,C,H,W,ch);
    # that is a memory no-op only for contiguous inputs with W == H.
    if W != H:
        raise ValueError("ChannelLinearAttention requires W == H")
    N = W * H * ch
    in_bytes = jnp.dtype(x.dtype).itemsize
    out_bytes = in_bytes

    if matmul_dtype is not None:
        dot_dtype = jnp.dtype(matmul_dtype)
    elif x.dtype == jnp.bfloat16:
        dot_dtype = jnp.bfloat16
    elif C >= 256:
        dot_dtype = jnp.bfloat16      # compute-bound regime: bf16 MXU, f32 accumulate
    else:
        dot_dtype = jnp.float32

    gamma = jnp.asarray(gamma, jnp.float32).reshape((1,))
    x_flat = x.reshape(B, C, N)

    vmem_limit = _vmem_limit_bytes()
    budget = int(vmem_limit * 0.8)
    n128 = _round_up(N, _LANE)

    # Single-pass feasibility: dbl-buffered in/out slabs + ~3 live f32 temps.
    per_elem_sp = 2 * in_bytes + 2 * out_bytes + 3 * 4
    slab_bytes = C * n128 * per_elem_sp
    use_single_pass = ((not force_two_pass) and tile_n is None
                       and slab_bytes <= budget)

    if use_single_pass:
        n_padded = n128
        needs_mask = n_padded != N
        if needs_mask:
            x_flat = jnp.pad(x_flat, ((0, 0), (0, 0), (0, n_padded - N)))

        bt_vmem = max(1, budget // slab_bytes)
        # Keep >= min(B, 4) grid steps so the prologue DMA is mostly hidden and
        # both v7x TensorCores get work; pack more only for tiny slabs.
        bt_cap = max(1, min(bt_vmem, B // min(B, 4)))
        step_bytes = C * n_padded * in_bytes
        if step_bytes * bt_cap < (1 << 19):
            bt_cap = min(bt_vmem, B, _cdiv(1 << 19, max(step_bytes, 1)))
        bt = _largest_divisor_leq(B, bt_cap)
        grid_b = B // bt

        kernel = functools.partial(
            _single_pass_kernel, eps=eps, n_valid=N,
            needs_mask=needs_mask, dot_dtype=dot_dtype)
        cost = pl.CostEstimate(
            flops=4 * B * C * C * n_padded + 10 * B * C * n_padded,
            transcendentals=2 * B * n_padded,
            bytes_accessed=2 * B * C * n_padded * in_bytes)

        out_flat = pl.pallas_call(
            kernel,
            out_shape=jax.ShapeDtypeStruct((B, C, n_padded), x.dtype),
            grid=(grid_b,),
            in_specs=[
                pl.BlockSpec(memory_space=pltpu.MemorySpace.SMEM),        # gamma
                pl.BlockSpec((bt, C, n_padded), lambda i: (i, 0, 0)),
            ],
            out_specs=pl.BlockSpec((bt, C, n_padded), lambda i: (i, 0, 0)),
            compiler_params=pltpu.CompilerParams(
                dimension_semantics=("parallel",),
                vmem_limit_bytes=vmem_limit),
            cost_estimate=cost,
        )(gamma, x_flat)
    else:
        # ---- tile selection: VMEM-budget sized, then pad N up to a multiple ----
        if tile_n is not None:
            tn = int(tile_n)
            assert tn % _LANE == 0, "tile_n must be a multiple of 128"
        else:
            tn = _pick_tile_n(n128, C, in_bytes, out_bytes, vmem_limit)
        num_tn = _cdiv(n128, tn)
        # B == 1 would leave one v7x TensorCore idle during the reduction:
        # split N into two halves with partial accumulators.
        nsplit = 2 if (B == 1 and num_tn >= 2) else 1
        if num_tn % nsplit:
            num_tn += nsplit - (num_tn % nsplit)
        if tile_n is None:
            # redistribute evenly so padding stays below ~128 columns per tile
            tn = _round_up(_cdiv(n128, num_tn), _LANE)
        n_padded = tn * num_tn
        tiles_per_split = num_tn // nsplit
        needs_mask = n_padded != N
        if needs_mask:
            x_flat = jnp.pad(x_flat, ((0, 0), (0, 0), (0, n_padded - N)))

        # ---- pass 1: accumulate Gram (C,C) and tailor numerator (C,1) ----
        accum = functools.partial(
            _accum_kernel, eps=eps, n_valid=N, tile_n=tn,
            tiles_per_split=tiles_per_split, needs_mask=needs_mask,
            dot_dtype=dot_dtype)
        cost1 = pl.CostEstimate(
            flops=2 * B * C * C * n_padded + 8 * B * C * n_padded,
            transcendentals=B * n_padded,
            bytes_accessed=B * C * n_padded * in_bytes
            + B * nsplit * C * (C + 1) * 4)
        part_mat, part_t = pl.pallas_call(
            accum,
            out_shape=(jax.ShapeDtypeStruct((B, nsplit, C, C), jnp.float32),
                       jax.ShapeDtypeStruct((B, nsplit, C, 1), jnp.float32)),
            grid=(B, nsplit, tiles_per_split),
            in_specs=[pl.BlockSpec(
                (None, C, tn),
                lambda b, s, n: (b, 0, s * tiles_per_split + n))],
            out_specs=(pl.BlockSpec((None, None, C, C),
                                    lambda b, s, n: (b, s, 0, 0)),
                       pl.BlockSpec((None, None, C, 1),
                                    lambda b, s, n: (b, s, 0, 0))),
            compiler_params=pltpu.CompilerParams(
                dimension_semantics=("parallel", "parallel", "arbitrary"),
                vmem_limit_bytes=vmem_limit),
            cost_estimate=cost1,
        )(x_flat)

        # Combine partial accumulators + exact tailor division (tiny, plain JAX).
        matrix = part_mat.sum(axis=1)                            # (B, C, C)
        tailor = 1.0 / (jnp.float32(N) + part_t.sum(axis=1))     # (B, C, 1)

        # ---- pass 2: per-tile output ----
        apply_k = functools.partial(
            _apply_kernel, n_valid=N, tile_n=tn,
            needs_mask=needs_mask, dot_dtype=dot_dtype)
        cost2 = pl.CostEstimate(
            flops=2 * B * C * C * n_padded + 8 * B * C * n_padded,
            transcendentals=B * n_padded,
            bytes_accessed=B * C * n_padded * (in_bytes + out_bytes)
            + B * C * (C + 1) * 4)
        out_flat = pl.pallas_call(
            apply_k,
            out_shape=jax.ShapeDtypeStruct((B, C, n_padded), x.dtype),
            grid=(B, num_tn),
            in_specs=[
                pl.BlockSpec(memory_space=pltpu.MemorySpace.SMEM),        # gamma
                pl.BlockSpec((None, C, tn), lambda b, n: (b, 0, n)),      # x tile
                pl.BlockSpec((None, C, C), lambda b, n: (b, 0, 0)),       # matrix
                pl.BlockSpec((None, C, 1), lambda b, n: (b, 0, 0)),       # tailor
            ],
            out_specs=pl.BlockSpec((None, C, tn), lambda b, n: (b, 0, n)),
            compiler_params=pltpu.CompilerParams(
                dimension_semantics=("parallel", "parallel"),
                vmem_limit_bytes=vmem_limit),
            cost_estimate=cost2,
        )(gamma, x_flat, matrix, tailor)

    if n_padded != N:
        out_flat = out_flat[:, :, :N]
    return out_flat.reshape(x.shape)


# ---------------------------------------------------------------------------
# Pure-JAX reference (mirror of the PyTorch forward) for verification
# ---------------------------------------------------------------------------
def channel_linear_attention_reference(x, gamma, eps=1e-6):
    B, C, W, H, ch = x.shape
    N = W * H * ch
    xf = x.reshape(B, C, N).astype(jnp.float32)
    inv_norm = 1.0 / jnp.sqrt(jnp.sum(xf * xf, axis=1))              # (B, N)
    Q = xf * inv_norm[:, None, :]                                    # (B, C, N)
    K = jnp.transpose(Q, (0, 2, 1))                                  # (B, N, C)
    s = jnp.sum(Q, axis=1) + eps                                     # (B, N)
    tailor = 1.0 / (N + jnp.einsum('bnc,bn->bc', K, s))              # (B, C)
    value_sum = jnp.sum(xf, axis=1)[:, None, :]                      # (B, 1, N)
    matrix = jnp.einsum('bcn,bnm->bcm', xf, K)                       # (B, C, C)
    matrix_sum = value_sum + jnp.einsum('bcm,bmn->bcn', matrix, Q)   # (B, C, N)
    weight_value = matrix_sum * tailor[:, :, None]                   # (B, C, N)
    return (xf + gamma[0] * weight_value).reshape(x.shape).astype(x.dtype)


if __name__ == "__main__":
    key = jax.random.PRNGKey(0)

    # Shapes consistent with the module: (B, C, W, H, ch); N = W*H*ch = 256.
    B, C, W, H, ch = 2, 8, 8, 8, 4
    x = jax.random.normal(key, (B, C, W, H, ch), dtype=jnp.float32)
    gamma0 = jnp.zeros((1,), dtype=jnp.float32)       # torch init: zeros(1)
    gamma1 = jnp.asarray([0.5], dtype=jnp.float32)

    out = channel_linear_attention(x, gamma1)
    jax.block_until_ready(out)

    def _check(got, ref, msg):
        assert jnp.allclose(got, ref, atol=2e-3, rtol=2e-3), msg

    # single-pass path (gamma = 0 and gamma = 0.5)
    _check(channel_linear_attention(x, gamma0),
           channel_linear_attention_reference(x, gamma0), "single-pass (gamma=0)")
    ref1 = channel_linear_attention_reference(x, gamma1)
    _check(out, ref1, "single-pass (gamma=0.5)")

    # forced two-pass path, explicit tile
    _check(channel_linear_attention(x, gamma1, force_two_pass=True, tile_n=128),
           ref1, "two-pass mismatch")

    # Non-128-multiple N exercises the padded / masked path (N = 6*6*3 = 108).
    x2 = jax.random.normal(jax.random.PRNGKey(1), (2, 5, 6, 6, 3),
                           dtype=jnp.float32)
    ref2 = channel_linear_attention_reference(x2, gamma1)
    _check(channel_linear_attention(x2, gamma1), ref2,
           "padded single-pass mismatch")
    _check(channel_linear_attention(x2, gamma1, force_two_pass=True), ref2,
           "padded two-pass mismatch")

    # B == 1 two-pass exercises the split-reduction (both-TensorCores) path.
    x3 = jax.random.normal(jax.random.PRNGKey(2), (1, 8, 8, 8, 4),
                           dtype=jnp.float32)
    ref3 = channel_linear_attention_reference(x3, gamma1)
    _check(channel_linear_attention(x3, gamma1, force_two_pass=True, tile_n=128),
           ref3, "split-reduction two-pass mismatch")

    print("KERNEL_OK")
</pallas_src>

<mosaic_0001>
module attributes {stable_mosaic.version = 11 : i64} {
  func.func @_single_pass_kernel(%arg0: i32, %arg1: memref<1xf32, #tpu.memory_space<smem>>, %arg2: memref<2x8x256xf32, #tpu.memory_space<vmem>>, %arg3: memref<2x8x256xf32, #tpu.memory_space<vmem>>) attributes {dimension_semantics = [#tpu.dimension_semantics<parallel>], iteration_bounds = array<i64: 1>, scalar_prefetch = 0 : i64, scratch_operands = 0 : i64, tpu.core_type = #tpu.core_type<tc>, window_params = [{transform_indices = @transform_0, window_bounds = array<i64: 1>}, {transform_indices = @transform_1, window_bounds = array<i64: 2, 8, 256>}, {transform_indices = @transform_2, window_bounds = array<i64: 2, 8, 256>}]} {
    %c0 = arith.constant 0 : index
    %c0_0 = arith.constant 0 : index
    %c0_1 = arith.constant 0 : index
    %0 = vector.load %arg2[%c0, %c0_0, %c0_1] : memref<2x8x256xf32, #tpu.memory_space<vmem>>, vector<2x8x256xf32>
    %1 = arith.mulf %0, %0 : vector<2x8x256xf32>
    %cst = arith.constant dense<0.000000e+00> : vector<2x256xf32>
    %2 = vector.multi_reduction <add>, %1, %cst [1] : vector<2x8x256xf32> to vector<2x256xf32>
    %3 = vector.shape_cast %2 : vector<2x256xf32> to vector<2x1x256xf32>
    %4 = math.rsqrt %3 : vector<2x1x256xf32>
    %5 = vector.broadcast %4 : vector<2x1x256xf32> to vector<2x8x256xf32>
    %6 = arith.mulf %0, %5 : vector<2x8x256xf32>
    %cst_2 = arith.constant dense<0.000000e+00> : vector<2x256xf32>
    %7 = vector.multi_reduction <add>, %6, %cst_2 [1] : vector<2x8x256xf32> to vector<2x256xf32>
    %8 = vector.shape_cast %7 : vector<2x256xf32> to vector<2x1x256xf32>
    %cst_3 = arith.constant 9.99999997E-7 : f32
    %9 = vector.broadcast %cst_3 : f32 to vector<2x1x256xf32>
    %10 = arith.addf %8, %9 : vector<2x1x256xf32>
    %11 = vector.broadcast %10 : vector<2x1x256xf32> to vector<2x8x256xf32>
    %12 = arith.mulf %6, %11 : vector<2x8x256xf32>
    %cst_4 = arith.constant dense<0.000000e+00> : vector<2x8xf32>
    %13 = vector.multi_reduction <add>, %12, %cst_4 [2] : vector<2x8x256xf32> to vector<2x8xf32>
    %14 = vector.shape_cast %13 : vector<2x8xf32> to vector<2x8x1xf32>
    %cst_5 = arith.constant 2.560000e+02 : f32
    %15 = vector.broadcast %cst_5 : f32 to vector<2x8x1xf32>
    %16 = arith.addf %15, %14 : vector<2x8x1xf32>
    %17 = tpu.reciprocal %16 {approx = true} : vector<2x8x1xf32> -> vector<2x8x1xf32>
    %18 = arith.mulf %16, %17 : vector<2x8x1xf32>
    %cst_6 = arith.constant 2.000000e+00 : f32
    %19 = vector.broadcast %cst_6 : f32 to vector<2x8x1xf32>
    %20 = arith.subf %19, %18 : vector<2x8x1xf32>
    %21 = arith.mulf %17, %20 : vector<2x8x1xf32>
    %cst_7 = arith.constant dense<0.000000e+00> : vector<2x256xf32>
    %22 = vector.multi_reduction <add>, %0, %cst_7 [1] : vector<2x8x256xf32> to vector<2x256xf32>
    %23 = vector.shape_cast %22 : vector<2x256xf32> to vector<2x1x256xf32>
    "tpu.trace_start"() <{level = 10 : i32, message = "bcn,bmn->bcm"}> : () -> ()
    %cst_8 = arith.constant dense<0.000000e+00> : vector<2x8x8xf32>
    %24 = tpu.matmul %0, %6, %cst_8 {dimension_numbers = #tpu.dot_dimension_numbers<[2], [2], [1], [1], [0, 0, 0, 1, 1, 1], [0], [0]>} : vector<2x8x256xf32>, vector<2x8x256xf32>, vector<2x8x8xf32> -> vector<2x8x8xf32>
    "tpu.trace_stop"() : () -> ()
    "tpu.trace_start"() <{level = 10 : i32, message = "bcm,bmn->bcn"}> : () -> ()
    %cst_9 = arith.constant dense<0.000000e+00> : vector<2x8x256xf32>
    %25 = tpu.matmul %24, %6, %cst_9 {dimension_numbers = #tpu.dot_dimension_numbers<[2], [1], [1], [2], [0, 0, 0, 1, 1, 2], [0], [0]>} : vector<2x8x8xf32>, vector<2x8x256xf32>, vector<2x8x256xf32> -> vector<2x8x256xf32>
    "tpu.trace_stop"() : () -> ()
    %26 = vector.broadcast %23 : vector<2x1x256xf32> to vector<2x8x256xf32>
    %27 = arith.addf %26, %25 : vector<2x8x256xf32>
    %28 = vector.broadcast %21 : vector<2x8x1xf32> to vector<2x8x256xf32>
    %29 = arith.mulf %27, %28 : vector<2x8x256xf32>
    %c0_10 = arith.constant 0 : index
    %30 = memref.load %arg1[%c0_10] : memref<1xf32, #tpu.memory_space<smem>>
    %31 = vector.broadcast %30 : f32 to vector<2x8x256xf32>
    %32 = arith.mulf %31, %29 : vector<2x8x256xf32>
    %33 = arith.addf %0, %32 : vector<2x8x256xf32>
    %c0_11 = arith.constant 0 : index
    %c0_12 = arith.constant 0 : index
    %c0_13 = arith.constant 0 : index
    %34 = vector.load %arg3[%c0_11, %c0_12, %c0_13] : memref<2x8x256xf32, #tpu.memory_space<vmem>>, vector<2x8x256xf32>
    tpu.vector_store %arg3[%c0_11, %c0_12, %c0_13], %33 {strides = array<i32>} : memref<2x8x256xf32, #tpu.memory_space<vmem>>, vector<2x8x256xf32>,
    return
  }
  func.func @transform_0(%arg0: i32) -> i32 {
    %c0_i32 = arith.constant 0 : i32
    %c0_i32_0 = arith.constant 0 : i32
    return %c0_i32 : i32
  }
  func.func @transform_1(%arg0: i32) -> (i32, i32, i32) {
    %c0_i32 = arith.constant 0 : i32
    %c0_i32_0 = arith.constant 0 : i32
    %c0_i32_1 = arith.constant 0 : i32
    return %arg0, %c0_i32, %c0_i32_0 : i32, i32, i32
  }
  func.func @transform_2(%arg0: i32) -> (i32, i32, i32) {
    %c0_i32 = arith.constant 0 : i32
    %c0_i32_0 = arith.constant 0 : i32
    %c0_i32_1 = arith.constant 0 : i32
    return %arg0, %c0_i32, %c0_i32_0 : i32, i32, i32
  }
}

</mosaic_0001>

<llo_original>
// kernel: tpu_custom_call.1
$region0: #{tpu_custom_call.1}
  #allocation0 [shape = 'u32[]', space=smem, size = 0x4, offset = 0x4, fixed_abs, tag = 'smem constant byte address 0x4 - core index']
  #allocation1 [shape = 'u32[72,128]{1,0:T(1,128)}', space=vmem, size = 0x9000, scoped, tag = 'internal scratch']
  #allocation2 [shape = 'f32[1]{0:T(128)S(6)}', space=smem, size = 0x200, scoped, tag = 'scoped memory for tpu_custom_call.1']
  %s0 = inlined_call_operand.<no memory space> [shape: f32[1], index: 0, kind: input, shape index: {}]
  %s1 = inlined_call_operand.hbm [shape: f32[2,8,256], index: 1, kind: input, shape index: {}]
  %s2 = inlined_call_operand.hbm [shape: f32[2,8,256], index: 2, kind: output, shape index: {}]
  %s3 = sld [smem:[#allocation0]]
  $region22: #{tpu_custom_call.1} parent=0
    _
  %s5 = ssub.s32 1, %s3
  %s6 = scalar_select 0, %s5, %s3
  %7 = sst [smem:[#allocation2]] %s0
  $region1: #{tpu_custom_call.1} parent=0
    #allocation3 [shape = 'u8[16384]{0}', space=vmem, size = 0x4000, scoped, tag = 'input window, operand 1, single buffered']
    #allocation4 [shape = 's32[1]{0}', space=sflag, size = 0x4, scoped, tag = 'scoped memory for tpu_custom_call.1']
    #allocation5 [shape = 's32[1]{0}', space=sflag, size = 0x4, scoped, tag = 'scoped memory for tpu_custom_call.1']
    #allocation6 [shape = 'u8[16384]{0}', space=vmem, size = 0x4000, scoped, tag = 'output window, operand 0, single buffered']
    %8 = vsyncpa [#allocation4], 0
    %9 = vsyncpa [#allocation5], 0
    // Predicated region
    $region2: #{tpu_custom_call.1} parent=1 // pred_check
      _
    $region3: #{tpu_custom_call.1} parent=1 // pred_check_branch
      %11 = sbr.rel (0) target = $region5
    $region4: #{tpu_custom_call.1} parent=1 // pred_region
      _
    $region5: #{tpu_custom_call.1} parent=1 // pred_fallthru
      _
    // Predicated region
    $region6: #{tpu_custom_call.1} parent=1 // pred_check
      _
    $region7: #{tpu_custom_call.1} parent=1 // pred_check_branch
      %13 = sbr.rel (0) target = $region9
    $region8: #{tpu_custom_call.1} parent=1 // pred_region
      %15 = vsyncadd [#allocation4], 0
      %s16 = sshll.u32 %s1, 4
      %s17 = int_to_ptr.hbm [resolvable:$true] %s16
      %s18 = sshll.u32 [#allocation3], 4
      %s19 = int_to_ptr.vmem [resolvable:$true] %s18
      %24 = dma.hbm_to_vmem [thread:$0]  %s17, 512, %s19, [#allocation4], 256, 256, 16
    $region9: #{tpu_custom_call.1} parent=1 // pred_fallthru
      _
    // Predicated region
    $region10: #{tpu_custom_call.1} parent=1 // pred_check
      _
    $region11: #{tpu_custom_call.1} parent=1 // pred_check_branch
      %26 = sbr.rel (0) target = $region13
    $region12: #{tpu_custom_call.1} parent=1 // pred_region
      %28 = dma.done [#allocation4], 512
    $region13: #{tpu_custom_call.1} parent=1 // pred_fallthru
      _
    %v29 = vld [vmem:[#allocation3] sm:$0xff]
    %v30 = vld [vmem:[#allocation3 + $0x8] sm:$0xff]
    %v31 = vld [vmem:[#allocation3 + $0x10] sm:$0xff]
    %v32 = vld [vmem:[#allocation3 + $0x18] sm:$0xff]
    %v33 = vmul.f32 %v29, %v29
    %v34 = vmul.f32 %v30, %v30
    %v35 = vmul.f32 %v31, %v31
    %v36 = vmul.f32 %v32, %v32
    %v37 = vrot.slane %v33, 4
    %v38 = vadd.f32 %v33, %v37
    %v39 = vrot.slane %v38, 2
    %v40 = vadd.f32 %v38, %v39
    %v41 = vrot.slane %v40, 1
    %v42 = vadd.f32 %v40, %v41
    %v43 = vrot.slane %v34, 4
    %v44 = vadd.f32 %v34, %v43
    %v45 = vrot.slane %v44, 2
    %v46 = vadd.f32 %v44, %v45
    %v47 = vrot.slane %v46, 1
    %v48 = vadd.f32 %v46, %v47
    %v49 = vrot.slane %v35, 4
    %v50 = vadd.f32 %v35, %v49
    %v51 = vrot.slane %v50, 2
    %v52 = vadd.f32 %v50, %v51
    %v53 = vrot.slane %v52, 1
    %v54 = vadd.f32 %v52, %v53
    %v55 = vrot.slane %v36, 4
    %v56 = vadd.f32 %v36, %v55
    %v57 = vrot.slane %v56, 2
    %v58 = vadd.f32 %v56, %v57
    %v59 = vrot.slane %v58, 1
    %v60 = vadd.f32 %v58, %v59
    %v61 = vrsqrt.pop %v42
    %v62 = vmul.f32 %v61, %v42
    %v63 = vmul.f32 %v62, %v61
    %v64 = vmul.f32 0.5, %v63
    %v65 = vsub.f32 1.5, %v64
    %v66 = vmul.f32 %v61, %v65
    %vm67 = vweird.f32 %v42
    %vm68 = vweird.f32 %v61
    %vm69 = vmor %vm67, %vm68
    %v70 = vsel %vm69, %v61, %v66
    %v71 = vrsqrt.pop %v48
    %v72 = vmul.f32 %v71, %v48
    %v73 = vmul.f32 %v72, %v71
    %v74 = vmul.f32 0.5, %v73
    %v75 = vsub.f32 1.5, %v74
    %v76 = vmul.f32 %v71, %v75
    %vm77 = vweird.f32 %v48
    %vm78 = vweird.f32 %v71
    %vm79 = vmor %vm77, %vm78
    %v80 = vsel %vm79, %v71, %v76
    %v81 = vrsqrt.pop %v54
    %v82 = vmul.f32 %v81, %v54
    %v83 = vmul.f32 %v82, %v81
    %v84 = vmul.f32 0.5, %v83
    %v85 = vsub.f32 1.5, %v84
    %v86 = vmul.f32 %v81, %v85
    %vm87 = vweird.f32 %v54
    %vm88 = vweird.f32 %v81
    %vm89 = vmor %vm87, %vm88
    %v90 = vsel %vm89, %v81, %v86
    %v91 = vrsqrt.pop %v60
    %v92 = vmul.f32 %v91, %v60
    %v93 = vmul.f32 %v92, %v91
    %v94 = vmul.f32 0.5, %v93
    %v95 = vsub.f32 1.5, %v94
    %v96 = vmul.f32 %v91, %v95
    %vm97 = vweird.f32 %v60
    %vm98 = vweird.f32 %v91
    %vm99 = vmor %vm97, %vm98
    %v100 = vsel %vm99, %v91, %v96
    %v101 = vmul.f32 %v29, %v70
    %v102 = vmul.f32 %v30, %v80
    %v103 = vmul.f32 %v31, %v90
    %v104 = vmul.f32 %v32, %v100
    %v105 = vrot.slane %v101, 4
    %v106 = vadd.f32 %v101, %v105
    %v107 = vrot.slane %v106, 2
    %v108 = vadd.f32 %v106, %v107
    %v109 = vrot.slane %v108, 1
    %v110 = vadd.f32 %v108, %v109
    %v111 = vrot.slane %v102, 4
    %v112 = vadd.f32 %v102, %v111
    %v113 = vrot.slane %v112, 2
    %v114 = vadd.f32 %v112, %v113
    %v115 = vrot.slane %v114, 1
    %v116 = vadd.f32 %v114, %v115
    %v117 = vrot.slane %v103, 4
    %v118 = vadd.f32 %v103, %v117
    %v119 = vrot.slane %v118, 2
    %v120 = vadd.f32 %v118, %v119
    %v121 = vrot.slane %v120, 1
    %v122 = vadd.f32 %v120, %v121
    %v123 = vrot.slane %v104, 4
    %v124 = vadd.f32 %v104, %v123
    %v125 = vrot.slane %v124, 2
    %v126 = vadd.f32 %v124, %v125
    %v127 = vrot.slane %v126, 1
    %v128 = vadd.f32 %v126, %v127
    %v129 = vadd.f32 %v110, 1e-06
    %v130 = vadd.f32 %v116, 1e-06
    %v131 = vadd.f32 %v122, 1e-06
    %v132 = vadd.f32 %v128, 1e-06
    %v133 = vmul.f32 %v101, %v129
    %v134 = vmul.f32 %v102, %v130
    %v135 = vmul.f32 %v103, %v131
    %v136 = vmul.f32 %v104, %v132
    %v137 = vadd.f32 %v133, %v134
    %138 = vadd.xlane.f32.xlu0 %v137
    %v139 = vpop.xlane.xlu0 %138
    %v140 = vadd.f32 %v135, %v136
    %141 = vadd.xlane.f32.xlu0 %v140
    %v142 = vpop.xlane.xlu0 %141
    %v143 = vadd.f32 %v139, 256.0
    %v144 = vadd.f32 %v142, 256.0
    %v145 = vrcp.pop %v143
    %v146 = vrcp.pop %v144
    %v147 = vmul.f32 %v143, %v145
    %v148 = vmul.f32 %v144, %v146
    %v149 = vsub.f32 2.0, %v147
    %v150 = vsub.f32 2.0, %v148
    %v151 = vmul.f32 %v145, %v149
    %v152 = vmul.f32 %v146, %v150
    %v153 = vrot.slane %v29, 4
    %v154 = vadd.f32 %v29, %v153
    %v155 = vrot.slane %v154, 2
    %v156 = vadd.f32 %v154, %v155
    %v157 = vrot.slane %v156, 1
    %v158 = vadd.f32 %v156, %v157
    %v159 = vrot.slane %v30, 4
    %v160 = vadd.f32 %v30, %v159
    %v161 = vrot.slane %v160, 2
    %v162 = vadd.f32 %v160, %v161
    %v163 = vrot.slane %v162, 1
    %v164 = vadd.f32 %v162, %v163
    %v165 = vrot.slane %v31, 4
    %v166 = vadd.f32 %v31, %v165
    %v167 = vrot.slane %v166, 2
    %v168 = vadd.f32 %v166, %v167
    %v169 = vrot.slane %v168, 1
    %v170 = vadd.f32 %v168, %v169
    %v171 = vrot.slane %v32, 4
    %v172 = vadd.f32 %v32, %v171
    %v173 = vrot.slane %v172, 2
    %v174 = vadd.f32 %v172, %v173
    %v175 = vrot.slane %v174, 1
    %v176 = vadd.f32 %v174, %v175
    %177 = vmatpush.xpose.msra.mxu0 0.0
    %178 = vmatpush.xpose.msra.mxu0 0.0
    %179 = vmatpush.xpose.msra.mxu0 0.0
    %180 = vmatpush.xpose.msra.mxu0 0.0
    %181 = vmatpush.xpose.msra.mxu0 0.0
    %182 = vmatpush.xpose.msra.mxu0 0.0
    %183 = vmatpush.xpose.msra.mxu0 0.0
    %184 = vmatpush.xpose.msra.mxu0 0.0
    %185 = vmatpush.xpose.msra.mxu0 0.0
    %186 = vmatpush.xpose.msra.mxu0 0.0
    %187 = vmatpush.xpose.msra.mxu0 0.0
    %188 = vmatpush.xpose.msra.mxu0 0.0
    %189 = vmatpush.xpose.msra.mxu0 0.0
    %190 = vmatpush.xpose.msra.mxu0 0.0
    %191 = vmatpush.xpose.msra.mxu0 0.0
    %192 = vmatpush.xpose.msra.mxu0 %v101
    %193 = vmatmul.f32.gmra.mxu0 %v29
    %v194 = vpop.f32.mrf.mxu0
    %v195 = vadd.f32 0.0, %v194
    %196 = vdwg.mxu0
    %197 = vmatpush.xpose.msra.mxu0 0.0
    %198 = vmatpush.xpose.msra.mxu0 0.0
    %199 = vmatpush.xpose.msra.mxu0 0.0
    %200 = vmatpush.xpose.msra.mxu0 0.0
    %201 = vmatpush.xpose.msra.mxu0 0.0
    %202 = vmatpush.xpose.msra.mxu0 0.0
    %203 = vmatpush.xpose.msra.mxu0 0.0
    %204 = vmatpush.xpose.msra.mxu0 0.0
    %205 = vmatpush.xpose.msra.mxu0 0.0
    %206 = vmatpush.xpose.msra.mxu0 0.0
    %207 = vmatpush.xpose.msra.mxu0 0.0
    %208 = vmatpush.xpose.msra.mxu0 0.0
    %209 = vmatpush.xpose.msra.mxu0 0.0
    %210 = vmatpush.xpose.msra.mxu0 0.0
    %211 = vmatpush.xpose.msra.mxu0 0.0
    %212 = vmatpush.xpose.msra.mxu0 %v102
    %213 = vmatmul.f32.gmra.mxu0 %v30
    %v214 = vpop.f32.mrf.mxu0
    %v215 = vadd.f32 %v195, %v214
    %216 = vdwg.mxu0
    %217 = vmatpush.xpose.msra.mxu0 0.0
    %218 = vmatpush.xpose.msra.mxu0 0.0
    %219 = vmatpush.xpose.msra.mxu0 0.0
    %220 = vmatpush.xpose.msra.mxu0 0.0
    %221 = vmatpush.xpose.msra.mxu0 0.0
    %222 = vmatpush.xpose.msra.mxu0 0.0
    %223 = vmatpush.xpose.msra.mxu0 0.0
    %224 = vmatpush.xpose.msra.mxu0 0.0
    %225 = vmatpush.xpose.msra.mxu0 0.0
    %226 = vmatpush.xpose.msra.mxu0 0.0
    %227 = vmatpush.xpose.msra.mxu0 0.0
    %228 = vmatpush.xpose.msra.mxu0 0.0
    %229 = vmatpush.xpose.msra.mxu0 0.0
    %230 = vmatpush.xpose.msra.mxu0 0.0
    %231 = vmatpush.xpose.msra.mxu0 0.0
    %232 = vmatpush.xpose.msra.mxu0 %v103
    %233 = vmatmul.f32.gmra.mxu0 %v31
    %v234 = vpop.f32.mrf.mxu0
    %v235 = vadd.f32 0.0, %v234
    %236 = vdwg.mxu0
    %237 = vmatpush.xpose.msra.mxu0 0.0
    %238 = vmatpush.xpose.msra.mxu0 0.0
    %239 = vmatpush.xpose.msra.mxu0 0.0
    %240 = vmatpush.xpose.msra.mxu0 0.0
    %241 = vmatpush.xpose.msra.mxu0 0.0
    %242 = vmatpush.xpose.msra.mxu0 0.0
    %243 = vmatpush.xpose.msra.mxu0 0.0
    %244 = vmatpush.xpose.msra.mxu0 0.0
    %245 = vmatpush.xpose.msra.mxu0 0.0
    %246 = vmatpush.xpose.msra.mxu0 0.0
    %247 = vmatpush.xpose.msra.mxu0 0.0
    %248 = vmatpush.xpose.msra.mxu0 0.0
    %249 = vmatpush.xpose.msra.mxu0 0.0
    %250 = vmatpush.xpose.msra.mxu0 0.0
    %251 = vmatpush.xpose.msra.mxu0 0.0
    %252 = vmatpush.xpose.msra.mxu0 %v104
    %253 = vmatmul.f32.gmra.mxu0 %v32
    %v254 = vpop.f32.mrf.mxu0
    %v255 = vadd.f32 %v235, %v254
    %256 = vdwg.mxu0
    %vm257 = vcmask 64512
    %v259 = vsel %vm257, %v215, 0
    %261 = vmatpush.msra.mxu0 0.0
    %262 = vmatpush.msra.mxu0 0.0
    %263 = vmatpush.msra.mxu0 0.0
    %264 = vmatpush.msra.mxu0 0.0
    %265 = vmatpush.msra.mxu0 0.0
    %266 = vmatpush.msra.mxu0 0.0
    %267 = vmatpush.msra.mxu0 0.0
    %268 = vmatpush.msra.mxu0 0.0
    %269 = vmatpush.msra.mxu0 0.0
    %270 = vmatpush.msra.mxu0 0.0
    %271 = vmatpush.msra.mxu0 0.0
    %272 = vmatpush.msra.mxu0 0.0
    %273 = vmatpush.msra.mxu0 0.0
    %274 = vmatpush.msra.mxu0 0.0
    %275 = vmatpush.msra.mxu0 0.0
    %276 = vmatpush.msra.mxu0 %v101
    %277 = vmatmul.f32.gmra.mxu0 %v259
    %v278 = vpop.f32.mrf.mxu0
    %v279 = vadd.f32 0.0, %v278
    %280 = vdwg.mxu0
    %281 = vmatpush.msra.mxu0 0.0
    %282 = vmatpush.msra.mxu0 0.0
    %283 = vmatpush.msra.mxu0 0.0
    %284 = vmatpush.msra.mxu0 0.0
    %285 = vmatpush.msra.mxu0 0.0
    %286 = vmatpush.msra.mxu0 0.0
    %287 = vmatpush.msra.mxu0 0.0
    %288 = vmatpush.msra.mxu0 0.0
    %289 = vmatpush.msra.mxu0 0.0
    %290 = vmatpush.msra.mxu0 0.0
    %291 = vmatpush.msra.mxu0 0.0
    %292 = vmatpush.msra.mxu0 0.0
    %293 = vmatpush.msra.mxu0 0.0
    %294 = vmatpush.msra.mxu0 0.0
    %295 = vmatpush.msra.mxu0 0.0
    %296 = vmatpush.msra.mxu0 %v102
    %297 = vmatmul.f32.gmra.mxu0 %v259
    %v298 = vpop.f32.mrf.mxu0
    %v299 = vadd.f32 0.0, %v298
    %300 = vdwg.mxu0
    %v302 = vsel %vm257, %v255, 0
    %304 = vmatpush.msra.mxu0 0.0
    %305 = vmatpush.msra.mxu0 0.0
    %306 = vmatpush.msra.mxu0 0.0
    %307 = vmatpush.msra.mxu0 0.0
    %308 = vmatpush.msra.mxu0 0.0
    %309 = vmatpush.msra.mxu0 0.0
    %310 = vmatpush.msra.mxu0 0.0
    %311 = vmatpush.msra.mxu0 0.0
    %312 = vmatpush.msra.mxu0 0.0
    %313 = vmatpush.msra.mxu0 0.0
    %314 = vmatpush.msra.mxu0 0.0
    %315 = vmatpush.msra.mxu0 0.0
    %316 = vmatpush.msra.mxu0 0.0
    %317 = vmatpush.msra.mxu0 0.0
    %318 = vmatpush.msra.mxu0 0.0
    %319 = vmatpush.msra.mxu0 %v103
    %320 = vmatmul.f32.gmra.mxu0 %v302
    %v321 = vpop.f32.mrf.mxu0
    %v322 = vadd.f32 0.0, %v321
    %323 = vdwg.mxu0
    %324 = vmatpush.msra.mxu0 0.0
    %325 = vmatpush.msra.mxu0 0.0
    %326 = vmatpush.msra.mxu0 0.0
    %327 = vmatpush.msra.mxu0 0.0
    %328 = vmatpush.msra.mxu0 0.0
    %329 = vmatpush.msra.mxu0 0.0
    %330 = vmatpush.msra.mxu0 0.0
    %331 = vmatpush.msra.mxu0 0.0
    %332 = vmatpush.msra.mxu0 0.0
    %333 = vmatpush.msra.mxu0 0.0
    %334 = vmatpush.msra.mxu0 0.0
    %335 = vmatpush.msra.mxu0 0.0
    %336 = vmatpush.msra.mxu0 0.0
    %337 = vmatpush.msra.mxu0 0.0
    %338 = vmatpush.msra.mxu0 0.0
    %339 = vmatpush.msra.mxu0 %v104
    %340 = vmatmul.f32.gmra.mxu0 %v302
    %v341 = vpop.f32.mrf.mxu0
    %v342 = vadd.f32 0.0, %v341
    %343 = vdwg.mxu0
    %v344 = vadd.f32 %v158, %v279
    %v345 = vadd.f32 %v164, %v299
    %v346 = vadd.f32 %v170, %v322
    %v347 = vadd.f32 %v176, %v342
    %v348 = vmul.f32 %v344, %v151
    %v349 = vmul.f32 %v345, %v151
    %v350 = vmul.f32 %v346, %v152
    %v351 = vmul.f32 %v347, %v152
    %s352 = sld [smem:[#allocation2]]
    %v353 = vstv %s352
    %v354 = vmul.f32 %v353, %v348
    %v355 = vmul.f32 %v353, %v349
    %v356 = vmul.f32 %v353, %v350
    %v357 = vmul.f32 %v353, %v351
    %v358 = vadd.f32 %v29, %v354
    %v359 = vadd.f32 %v30, %v355
    %v360 = vadd.f32 %v31, %v356
    %v361 = vadd.f32 %v32, %v357
    %362 = vst [vmem:[#allocation6] sm:$0xff] %v358
    %363 = vst [vmem:[#allocation6 + $0x8] sm:$0xff] %v359
    %364 = vst [vmem:[#allocation6 + $0x10] sm:$0xff] %v360
    %365 = vst [vmem:[#allocation6 + $0x18] sm:$0xff] %v361
    // Predicated region
    $region14: #{tpu_custom_call.1} parent=1 // pred_check
      _
    $region15: #{tpu_custom_call.1} parent=1 // pred_check_branch
      %367 = sbr.rel (0) target = $region17
    $region16: #{tpu_custom_call.1} parent=1 // pred_region
      %369 = vsyncadd [#allocation5], 0
      %s370 = sshll.u32 [#allocation6], 4
      %s371 = int_to_ptr.vmem [resolvable:$true] %s370
      %s372 = sshll.u32 %s2, 4
      %s373 = int_to_ptr.hbm [resolvable:$true] %s372
      %378 = dma.vmem_to_hbm [thread:$0]  %s371, 512, %s373, [#allocation5], 256, 256, 16
    $region17: #{tpu_custom_call.1} parent=1 // pred_fallthru
      _
    // Predicated region
    $region18: #{tpu_custom_call.1} parent=1 // pred_check
      _
    $region19: #{tpu_custom_call.1} parent=1 // pred_check_branch
      %380 = sbr.rel (0) target = $region21
    $region20: #{tpu_custom_call.1} parent=1 // pred_region
      %382 = dma.done [#allocation5], 512
    $region21: #{tpu_custom_call.1} parent=1 // pred_fallthru
      _
    %383 = vsyncpa [#allocation4], 1
    %384 = vsyncpa [#allocation5], 1

</llo_original>
